<compile_context>
chip_gen: v5e
topology: v5e:2x2
jax: 0.10.0
libtpu: 0.0.40
codegen_flags: <defaults>
</compile_context>

<pallas_src>
import math
import functools

import jax
import jax.numpy as jnp
from jax.experimental import pallas as pl
from jax.experimental.pallas import tpu as pltpu

_SHIFT = math.log(2.0)  # matches torch.log(torch.tensor(2.0)).item()
_SOFTPLUS_ACTS = frozenset({"sp", "leaky_sp", "ssp", "leaky_ssp"})

_LANE = 1024            # lane-dense width (multiple of 128)
_MAX_BLOCK_ROWS = 512   # 512 x 1024 f32 = 2 MiB per buffer


def _softplus(x):
    # PyTorch F.softplus(beta=1, threshold=20): linear above threshold.
    return jnp.where(x > 20.0, x, jnp.log1p(jnp.exp(jnp.minimum(x, 20.0))))


def _elu(x):
    # F.elu(alpha=1)
    return jnp.where(x > 0.0, x, jnp.exp(jnp.minimum(x, 0.0)) - 1.0)


def _act_math(x, act, slope):
    if act == "relu":
        return jnp.maximum(x, 0.0)
    elif act == "leaky_relu":
        # F.leaky_relu default negative_slope = 0.01
        return jnp.where(x >= 0.0, x, 0.01 * x)
    elif act == "sp":
        return _softplus(x)
    elif act == "leaky_sp":
        return _softplus(x) - slope * jnp.maximum(-x, 0.0)
    elif act == "elu":
        return _elu(x)
    elif act == "leaky_elu":
        return _elu(x) - slope * jnp.maximum(-x, 0.0)
    elif act == "ssp":
        return _softplus(x) - _SHIFT
    elif act == "leaky_ssp":
        return _softplus(x) - slope * jnp.maximum(-x, 0.0) - _SHIFT
    elif act == "tanh":
        return jnp.tanh(x)
    elif act == "leaky_tanh":
        return jnp.tanh(x) + slope * x
    elif act == "swish":
        # sigmoid lowers to EUP exp + reciprocal; VALU stays free.
        return x * jax.nn.sigmoid(x)
    else:
        raise RuntimeError(f"Undefined activation called {act}")


def _make_kernel(act, slope, compute_dtype):
    def kernel(x_ref, o_ref):
        x = x_ref[...].astype(compute_dtype)
        o_ref[...] = _act_math(x, act, slope).astype(o_ref.dtype)
    return kernel


def _round_up(a, b):
    return (a + b - 1) // b * b


def _pick_compute_dtype(dtype, act):
    # bf16 math on bf16 inputs (v6e/v7x have bf16 VPU/EUP); keep f32 for the
    # softplus variants where precision matters.
    if dtype == jnp.bfloat16 and act not in _SOFTPLUS_ACTS:
        return jnp.bfloat16
    return jnp.float32


@functools.partial(jax.jit, static_argnames=("act", "slope"))
def act_pallas(x, act, slope=0.05):
    """Elementwise activation matching fairchem `Act.forward`.

    Accepts any shape/dtype; internally reshaped to a lane-dense
    [rows, 1024] slab and tiled over a 1-D grid.
    """
    orig_shape = x.shape
    total = int(x.size)
    if total == 0:
        return x

    # Lane-dense slab: pad flat length to a whole number of (block_rows, 1024)
    # tiles so the grid divides evenly; padded tail (zeros) is sliced off.
    rows = pl.cdiv(total, _LANE)
    block_rows = min(_MAX_BLOCK_ROWS, _round_up(rows, 8))  # (8,128)-aligned
    padded_rows = _round_up(rows, block_rows)
    padded_total = padded_rows * _LANE

    flat = x.reshape(-1)
    if padded_total != total:
        flat = jnp.pad(flat, (0, padded_total - total))
    x2 = flat.reshape(padded_rows, _LANE)

    grid = (padded_rows // block_rows,)
    compute_dtype = _pick_compute_dtype(x.dtype, act)

    out2 = pl.pallas_call(
        _make_kernel(act, slope, compute_dtype),
        out_shape=jax.ShapeDtypeStruct(x2.shape, x.dtype),
        grid=grid,
        in_specs=[pl.BlockSpec((block_rows, _LANE), lambda i: (i, 0))],
        out_specs=pl.BlockSpec((block_rows, _LANE), lambda i: (i, 0)),
        compiler_params=pltpu.CompilerParams(
            dimension_semantics=("parallel",),
        ),
    )(x2)

    out_flat = out2.reshape(-1)
    if padded_total != total:
        out_flat = out_flat[:total]
    return out_flat.reshape(orig_shape)


def _reference(x, act, slope=0.05):
    # pure-jnp reference (same math, outside the kernel) for a sanity check
    compute_dtype = _pick_compute_dtype(x.dtype, act)
    return _act_math(x.astype(compute_dtype), act, slope).astype(x.dtype)


if __name__ == "__main__":
    key = jax.random.PRNGKey(0)
    k1, k2, k3 = jax.random.split(key, 3)

    acts = [
        "relu", "leaky_relu", "sp", "leaky_sp", "elu", "leaky_elu",
        "ssp", "leaky_ssp", "tanh", "leaky_tanh", "swish",
    ]

    # Primary NCHW test shape for the module, plus a bf16 variant and a
    # multi-block / padded-tail case to exercise the tiling path.
    x_small = jax.random.normal(k1, (2, 4, 16, 16), dtype=jnp.float32) * 3.0
    x_bf16 = (jax.random.normal(k2, (2, 4, 16, 16), dtype=jnp.float32) * 3.0
              ).astype(jnp.bfloat16)
    x_multi = jax.random.normal(k3, (4, 4, 192, 192), dtype=jnp.float32) * 3.0

    configs = [
        ("f32 small", x_small, 1e-5, 1e-5),
        ("bf16 small", x_bf16, 2e-2, 2e-2),
        ("f32 multi-block", x_multi, 1e-5, 1e-5),
    ]

    ok = True
    for name, x, rtol, atol in configs:
        for act in acts:
            y = jax.block_until_ready(act_pallas(x, act))
            y_ref = _reference(x, act)
            if not jnp.allclose(y.astype(jnp.float32),
                                y_ref.astype(jnp.float32),
                                rtol=rtol, atol=atol):
                ok = False
                print(f"MISMATCH for config={name} act={act}")

    if ok:
        print("KERNEL_OK")
</pallas_src>

<mosaic_0001>
module attributes {stable_mosaic.version = 11 : i64} {
  func.func @kernel(%arg0: i32, %arg1: memref<8x1024xf32, #tpu.memory_space<vmem>>, %arg2: memref<8x1024xf32, #tpu.memory_space<vmem>>) attributes {dimension_semantics = [#tpu.dimension_semantics<parallel>], iteration_bounds = array<i64: 1>, scalar_prefetch = 0 : i64, scratch_operands = 0 : i64, tpu.core_type = #tpu.core_type<tc>, window_params = [{transform_indices = @transform_0, window_bounds = array<i64: 8, 1024>}, {transform_indices = @transform_1, window_bounds = array<i64: 8, 1024>}]} {
    %c0 = arith.constant 0 : index
    %c0_0 = arith.constant 0 : index
    %0 = vector.load %arg1[%c0, %c0_0] : memref<8x1024xf32, #tpu.memory_space<vmem>>, vector<8x1024xf32>
    %cst = arith.constant 0.000000e+00 : f32
    %1 = vector.broadcast %cst : f32 to vector<8x1024xf32>
    %2 = arith.maximumf %0, %1 : vector<8x1024xf32>
    %c0_1 = arith.constant 0 : index
    %c0_2 = arith.constant 0 : index
    %3 = vector.load %arg2[%c0_1, %c0_2] : memref<8x1024xf32, #tpu.memory_space<vmem>>, vector<8x1024xf32>
    tpu.vector_store %arg2[%c0_1, %c0_2], %2 {strides = array<i32>} : memref<8x1024xf32, #tpu.memory_space<vmem>>, vector<8x1024xf32>,
    return
  }
  func.func @transform_0(%arg0: i32) -> (i32, i32) {
    %c0_i32 = arith.constant 0 : i32
    %c0_i32_0 = arith.constant 0 : i32
    return %arg0, %c0_i32 : i32, i32
  }
  func.func @transform_1(%arg0: i32) -> (i32, i32) {
    %c0_i32 = arith.constant 0 : i32
    %c0_i32_0 = arith.constant 0 : i32
    return %arg0, %c0_i32 : i32, i32
  }
}

</mosaic_0001>

<llo_original>
// kernel: act_pallas.1
$region0: #{act_pallas.1}
  #allocation0 [shape = 'u32[]', space=smem, size = 0x4, offset = 0x4, fixed_abs, tag = 'smem constant byte address 0x4 - core index']
  #allocation1 [shape = 'u32[72,128]{1,0:T(1,128)}', space=vmem, size = 0x9000, scoped, tag = 'internal scratch']
  %s0 = inlined_call_operand.vmem [shape: f32[8,1024], index: 0, kind: input, shape index: {}]
  %s1 = inlined_call_operand.vmem [shape: f32[8,1024], index: 1, kind: output, shape index: {}]
  %s2 = sld [smem:[#allocation0]]
  $region14: #{act_pallas.1} parent=0
    _
  %s4 = ssub.s32 1, %s2
  %s5 = scalar_select 0, %s4, %s2
  // Predicated region
  $region2: #{act_pallas.1} parent=0 // pred_check
    _
  $region3: #{act_pallas.1} parent=0 // pred_check_branch
    %7 = sbr.rel (0) target = $region5
  $region4: #{act_pallas.1} parent=0 // pred_region
    _
  $region5: #{act_pallas.1} parent=0 // pred_fallthru
    _
  %v8 = vld [vmem:[%s0] sm:$0xff]
  %v9 = vld [vmem:[%s0 + $0x8] sm:$0xff]
  %v10 = vld [vmem:[%s0 + $0x10] sm:$0xff]
  %v11 = vld [vmem:[%s0 + $0x18] sm:$0xff]
  %v12 = vld [vmem:[%s0 + $0x20] sm:$0xff]
  %v13 = vld [vmem:[%s0 + $0x28] sm:$0xff]
  %v14 = vld [vmem:[%s0 + $0x30] sm:$0xff]
  %v15 = vld [vmem:[%s0 + $0x38] sm:$0xff]
  %v16 = vmax.f32 %v8, 0.0
  %v17 = vmax.f32 %v9, 0.0
  %v18 = vmax.f32 %v10, 0.0
  %v19 = vmax.f32 %v11, 0.0
  %v20 = vmax.f32 %v12, 0.0
  %v21 = vmax.f32 %v13, 0.0
  %v22 = vmax.f32 %v14, 0.0
  %v23 = vmax.f32 %v15, 0.0
  %24 = vst [vmem:[%s1] sm:$0xff] %v16
  %25 = vst [vmem:[%s1 + $0x8] sm:$0xff] %v17
  %26 = vst [vmem:[%s1 + $0x10] sm:$0xff] %v18
  %27 = vst [vmem:[%s1 + $0x18] sm:$0xff] %v19
  %28 = vst [vmem:[%s1 + $0x20] sm:$0xff] %v20
  %29 = vst [vmem:[%s1 + $0x28] sm:$0xff] %v21
  %30 = vst [vmem:[%s1 + $0x30] sm:$0xff] %v22
  %31 = vst [vmem:[%s1 + $0x38] sm:$0xff] %v23
  // Predicated region
  $region6: #{act_pallas.1} parent=0 // pred_check
    _
  $region7: #{act_pallas.1} parent=0 // pred_check_branch
    %33 = sbr.rel (0) target = $region9
  $region8: #{act_pallas.1} parent=0 // pred_region
    _
  $region9: #{act_pallas.1} parent=0 // pred_fallthru
    _
  // Predicated region
  $region10: #{act_pallas.1} parent=0 // pred_check
    _
  $region11: #{act_pallas.1} parent=0 // pred_check_branch
    %35 = sbr.rel (0) target = $region13
  $region12: #{act_pallas.1} parent=0 // pred_region
    _
  $region13: #{act_pallas.1} parent=0 // pred_fallthru
    _

</llo_original>
